<compile_context>
chip_gen: v7x
topology: tpu7x:2x2x1
jax: 0.10.0
libtpu: 0.0.40
codegen_flags: <defaults>
</compile_context>

<pallas_src>
import jax
import jax.numpy as jnp
from jax.experimental import pallas as pl
from jax.experimental.pallas import tpu as pltpu

_LANE = 128     # TPU lane width
_SUBLANE = 8    # f32 sublane packing


def _round_up(x, m):
    return (x + m - 1) // m * m


def _mlp_kernel(x_ref, w1_ref, b1_ref, w2_ref, b2_ref, o_ref, h_ref):
    # The embedding (N) axis is innermost and "arbitrary": compute the hidden
    # activation once per batch tile (j == 0) and reuse it for all emb tiles.
    @pl.when(pl.program_id(1) == 0)
    def _():
        # fc1: cast x to bf16 IN-KERNEL (avoids a wrapper-side HBM pass);
        # bf16 x bf16 MXU matmul with f32 accumulation, bias + ReLU in f32.
        h = jnp.dot(x_ref[...].astype(jnp.bfloat16), w1_ref[...],
                    preferred_element_type=jnp.float32)
        h_ref[...] = jnp.maximum(h + b1_ref[...], 0.0)

    # fc2: keep h and W2 in f32 for accuracy (kernel is HBM-bound, the extra
    # MXU passes are free).  Store in the caller's output dtype.
    y = jnp.dot(h_ref[...], w2_ref[...], preferred_element_type=jnp.float32)
    o_ref[...] = (y + b2_ref[...]).astype(o_ref.dtype)


def _vmem_capacity_bytes():
    """Per-TensorCore VMEM capacity, with a conservative (v7x) fallback."""
    try:
        info = pltpu.get_tpu_info()
        cap = getattr(info, "vmem_capacity_bytes", None)
        if cap:
            return int(cap)
    except Exception:
        pass
    return 64 << 20


def simple_nn_forward(x, w1, b1, w2, b2, *, out_dtype=None):
    """Fused SimpleNN forward.

    x  : [B, input_dim]            (f32 or bf16, used as-is — no wrapper copy)
    w1 : [input_dim, 64]   b1 : [1, 64]  (or [64])
    w2 : [64, emb]         b2 : [1, emb] (or [emb])
    returns [B, emb] in `out_dtype` (default: x.dtype)
    """
    B, input_dim = x.shape
    hidden = w1.shape[1]
    emb = w2.shape[1]
    out_dtype = x.dtype if out_dtype is None else out_dtype

    # ---- embedding (N) tiling: lane-dense tiles when emb % 128 == 0,
    #      otherwise a single full-width tile (no padded buffer, no slice). ----
    if emb % _LANE == 0:
        tn = min(emb, 1024)
        while emb % tn:
            tn -= _LANE
    else:
        tn = emb
    num_n = emb // tn

    # ---- generation-aware VMEM budget & batch tile ----
    cap = _vmem_capacity_bytes()
    budget = int(0.75 * cap)          # headroom: ~48 MiB on v7x, ~96 MiB on v5e/v6e
    x_bytes = jnp.dtype(x.dtype).itemsize
    o_bytes = jnp.dtype(out_dtype).itemsize
    hid_pad = _round_up(hidden, _LANE)
    tn_pad = _round_up(tn, _LANE)

    def footprint(tb):
        f = 2 * tb * input_dim * x_bytes          # x tile (double-buffered)
        f += 2 * tb * tn * o_bytes                # out tile (double-buffered)
        f += tb * hid_pad * 4                     # h scratch (f32, lane-padded)
        # Weights are counted double-buffered (conservative).  W1/b1 have a
        # constant index map so Mosaic never re-DMAs them; pipeline_mode=
        # pl.Buffered(1) would reclaim the second buffer if VMEM gets tight.
        f += 2 * (input_dim * hid_pad * 2 + hid_pad * 4)   # W1 bf16 + b1 f32
        f += 2 * (hidden * tn_pad * 4 + tn_pad * 4)        # W2/b2 tile (f32)
        return f

    tb_max = 2048 if cap >= (100 << 20) else 512   # bigger tiles on v5e/v6e
    tb = min(tb_max, _round_up(B, _SUBLANE))
    while tb > _SUBLANE and footprint(tb) > budget:
        tb = _round_up(tb // 2, _SUBLANE)
    num_b = pl.cdiv(B, tb)                         # ragged tail handled by Pallas

    vmem_limit = int(1.3 * footprint(tb)) + (1 << 20)
    vmem_limit = max(4 << 20, min(vmem_limit, budget))

    # ---- operand prep: weights only (tiny, one-time); x untouched ----
    w1_p = w1.astype(jnp.bfloat16)
    b1_p = b1.reshape(1, hidden).astype(jnp.float32)
    w2_p = w2.astype(jnp.float32)
    b2_p = b2.reshape(1, emb).astype(jnp.float32)

    flops = 2 * B * hidden * (input_dim + emb)
    bytes_accessed = (B * input_dim * x_bytes + B * emb * o_bytes
                      + input_dim * hidden * 2 + hidden * emb * 4
                      + hidden * 4 + emb * 4)

    # TODO(synk): if the narrow x DMA shows up as exposed (tiny input_dim),
    # bump the x BlockSpec to pipeline_mode=pl.Buffered(3) or lane-fold rows.
    out = pl.pallas_call(
        _mlp_kernel,
        out_shape=jax.ShapeDtypeStruct((B, emb), out_dtype),
        grid_spec=pltpu.PrefetchScalarGridSpec(
            num_scalar_prefetch=0,
            grid=(num_b, num_n),
            in_specs=[
                pl.BlockSpec((tb, input_dim), lambda i, j: (i, 0)),     # x (native dtype)
                pl.BlockSpec((input_dim, hidden), lambda i, j: (0, 0)),  # W1 (resident, bf16)
                pl.BlockSpec((1, hidden), lambda i, j: (0, 0)),          # b1 (f32)
                pl.BlockSpec((hidden, tn), lambda i, j: (0, j)),         # W2 tile (f32)
                pl.BlockSpec((1, tn), lambda i, j: (0, j)),              # b2 tile (f32)
            ],
            out_specs=pl.BlockSpec((tb, tn), lambda i, j: (i, j)),
            scratch_shapes=[pltpu.VMEM((tb, hidden), jnp.float32)],      # h (reused over j)
        ),
        compiler_params=pltpu.CompilerParams(
            dimension_semantics=("parallel", "arbitrary"),
            vmem_limit_bytes=vmem_limit),
        cost_estimate=pl.CostEstimate(
            flops=flops, transcendentals=0, bytes_accessed=bytes_accessed),
    )(x, w1_p, b1_p, w2_p, b2_p)

    return out


def init_params(key, input_dim, embedding_dim, hidden=64, dtype=jnp.float32):
    """Deterministic synthetic parameters (nn.Linear shapes, transposed)."""
    k1, k2, k3, k4 = jax.random.split(key, 4)
    s1 = 1.0 / jnp.sqrt(input_dim)
    s2 = 1.0 / jnp.sqrt(hidden)
    w1 = jax.random.uniform(k1, (input_dim, hidden), dtype, -s1, s1)
    b1 = jax.random.uniform(k2, (1, hidden), dtype, -s1, s1)
    w2 = jax.random.uniform(k3, (hidden, embedding_dim), dtype, -s2, s2)
    b2 = jax.random.uniform(k4, (1, embedding_dim), dtype, -s2, s2)
    return w1, b1, w2, b2


if __name__ == "__main__":
    key = jax.random.PRNGKey(0)
    kx, kp = jax.random.split(key)

    B, input_dim, embedding_dim = 8, 32, 16
    x = jax.random.normal(kx, (B, input_dim), jnp.float32)
    w1, b1, w2, b2 = init_params(kp, input_dim, embedding_dim)

    out = jax.block_until_ready(simple_nn_forward(x, w1, b1, w2, b2))
    assert out.shape == (B, embedding_dim)
    assert out.dtype == x.dtype

    # Reference matching the kernel's numerics (bf16 fc1 operands, f32 elsewhere).
    f32 = jnp.float32
    xb = x.astype(jnp.bfloat16).astype(f32)
    w1b = w1.astype(jnp.bfloat16).astype(f32)
    h_ref = jnp.maximum(xb @ w1b + b1, 0.0)
    ref = h_ref @ w2 + b2
    assert jnp.allclose(out, ref, atol=2e-3, rtol=2e-3)

    # Sanity check vs. full-precision math (bf16 rounding tolerance).
    ref_f32 = jnp.maximum(x @ w1 + b1, 0.0) @ w2 + b2
    assert jnp.allclose(out, ref_f32, atol=5e-2, rtol=5e-2)

    print("KERNEL_OK")
</pallas_src>

<mosaic_0001>
module attributes {stable_mosaic.version = 11 : i64} {
  func.func @_mlp_kernel(%arg0: i32, %arg1: i32, %arg2: memref<8x32xf32, #tpu.memory_space<vmem>>, %arg3: memref<32x64xbf16, #tpu.memory_space<vmem>>, %arg4: memref<1x64xf32, #tpu.memory_space<vmem>>, %arg5: memref<64x16xf32, #tpu.memory_space<vmem>>, %arg6: memref<1x16xf32, #tpu.memory_space<vmem>>, %arg7: memref<8x16xf32, #tpu.memory_space<vmem>>, %arg8: memref<8x64xf32, #tpu.memory_space<vmem>>) attributes {dimension_semantics = [#tpu.dimension_semantics<parallel>, #tpu.dimension_semantics<arbitrary>], iteration_bounds = array<i64: 1, 1>, scalar_prefetch = 0 : i64, scratch_operands = 1 : i64, tpu.core_type = #tpu.core_type<tc>, window_params = [{transform_indices = @transform_0, window_bounds = array<i64: 8, 32>}, {pipeline_mode = #tpu.pipeline_mode<synchronous>, transform_indices = @transform_1, window_bounds = array<i64: 32, 64>}, {pipeline_mode = #tpu.pipeline_mode<synchronous>, transform_indices = @transform_2, window_bounds = array<i64: 1, 64>}, {transform_indices = @transform_3, window_bounds = array<i64: 64, 16>}, {transform_indices = @transform_4, window_bounds = array<i64: 1, 16>}, {transform_indices = @transform_5, window_bounds = array<i64: 8, 16>}]} {
    %c0_i32 = arith.constant 0 : i32
    %0 = arith.cmpi eq, %arg1, %c0_i32 : i32
    %1 = arith.extui %0 : i1 to i32
    %c0_i32_0 = arith.constant 0 : i32
    %2 = arith.cmpi ne, %1, %c0_i32_0 : i32
    scf.if %2 {
      %c0_8 = arith.constant 0 : index
      %c0_9 = arith.constant 0 : index
      %10 = vector.load %arg2[%c0_8, %c0_9] : memref<8x32xf32, #tpu.memory_space<vmem>>, vector<8x32xf32>
      %11 = arith.truncf %10 : vector<8x32xf32> to vector<8x32xbf16>
      %c0_10 = arith.constant 0 : index
      %c0_11 = arith.constant 0 : index
      %12 = vector.load %arg3[%c0_10, %c0_11] : memref<32x64xbf16, #tpu.memory_space<vmem>>, vector<32x64xbf16>
      %cst_12 = arith.constant dense<0.000000e+00> : vector<8x64xf32>
      %13 = tpu.matmul %11, %12, %cst_12 {dimension_numbers = #tpu.dot_dimension_numbers<[1], [0], [0], [1], [0, 0, 1, 1], [], []>} : vector<8x32xbf16>, vector<32x64xbf16>, vector<8x64xf32> -> vector<8x64xf32>
      %c0_13 = arith.constant 0 : index
      %c0_14 = arith.constant 0 : index
      %14 = vector.load %arg4[%c0_13, %c0_14] : memref<1x64xf32, #tpu.memory_space<vmem>>, vector<1x64xf32>
      %15 = vector.broadcast %14 : vector<1x64xf32> to vector<8x64xf32>
      %16 = arith.addf %13, %15 : vector<8x64xf32>
      %cst_15 = arith.constant 0.000000e+00 : f32
      %17 = vector.broadcast %cst_15 : f32 to vector<8x64xf32>
      %18 = arith.maximumf %16, %17 : vector<8x64xf32>
      %c0_16 = arith.constant 0 : index
      %c0_17 = arith.constant 0 : index
      %19 = vector.load %arg8[%c0_16, %c0_17] : memref<8x64xf32, #tpu.memory_space<vmem>>, vector<8x64xf32>
      tpu.vector_store %arg8[%c0_16, %c0_17], %18 {strides = array<i32>} : memref<8x64xf32, #tpu.memory_space<vmem>>, vector<8x64xf32>,
    } else {
    }
    %c0 = arith.constant 0 : index
    %c0_1 = arith.constant 0 : index
    %3 = vector.load %arg8[%c0, %c0_1] : memref<8x64xf32, #tpu.memory_space<vmem>>, vector<8x64xf32>
    %c0_2 = arith.constant 0 : index
    %c0_3 = arith.constant 0 : index
    %4 = vector.load %arg5[%c0_2, %c0_3] : memref<64x16xf32, #tpu.memory_space<vmem>>, vector<64x16xf32>
    %cst = arith.constant dense<0.000000e+00> : vector<8x16xf32>
    %5 = tpu.matmul %3, %4, %cst {dimension_numbers = #tpu.dot_dimension_numbers<[1], [0], [0], [1], [0, 0, 1, 1], [], []>} : vector<8x64xf32>, vector<64x16xf32>, vector<8x16xf32> -> vector<8x16xf32>
    %c0_4 = arith.constant 0 : index
    %c0_5 = arith.constant 0 : index
    %6 = vector.load %arg6[%c0_4, %c0_5] : memref<1x16xf32, #tpu.memory_space<vmem>>, vector<1x16xf32>
    %7 = vector.broadcast %6 : vector<1x16xf32> to vector<8x16xf32>
    %8 = arith.addf %5, %7 : vector<8x16xf32>
    %c0_6 = arith.constant 0 : index
    %c0_7 = arith.constant 0 : index
    %9 = vector.load %arg7[%c0_6, %c0_7] : memref<8x16xf32, #tpu.memory_space<vmem>>, vector<8x16xf32>
    tpu.vector_store %arg7[%c0_6, %c0_7], %8 {strides = array<i32>} : memref<8x16xf32, #tpu.memory_space<vmem>>, vector<8x16xf32>,
    return
  }
  func.func @transform_0(%arg0: i32, %arg1: i32) -> (i32, i32) {
    %c0_i32 = arith.constant 0 : i32
    %c0_i32_0 = arith.constant 0 : i32
    return %arg0, %c0_i32 : i32, i32
  }
  func.func @transform_1(%arg0: i32, %arg1: i32) -> (i32, i32) {
    %c0_i32 = arith.constant 0 : i32
    %c0_i32_0 = arith.constant 0 : i32
    %c0_i32_1 = arith.constant 0 : i32
    return %c0_i32, %c0_i32_0 : i32, i32
  }
  func.func @transform_2(%arg0: i32, %arg1: i32) -> (i32, i32) {
    %c0_i32 = arith.constant 0 : i32
    %c0_i32_0 = arith.constant 0 : i32
    %c0_i32_1 = arith.constant 0 : i32
    return %c0_i32, %c0_i32_0 : i32, i32
  }
  func.func @transform_3(%arg0: i32, %arg1: i32) -> (i32, i32) {
    %c0_i32 = arith.constant 0 : i32
    %c0_i32_0 = arith.constant 0 : i32
    return %c0_i32, %arg1 : i32, i32
  }
  func.func @transform_4(%arg0: i32, %arg1: i32) -> (i32, i32) {
    %c0_i32 = arith.constant 0 : i32
    %c0_i32_0 = arith.constant 0 : i32
    return %c0_i32, %arg1 : i32, i32
  }
  func.func @transform_5(%arg0: i32, %arg1: i32) -> (i32, i32) {
    %c0_i32 = arith.constant 0 : i32
    return %arg0, %arg1 : i32, i32
  }
}

</mosaic_0001>

<llo_original>
// kernel: tpu_custom_call.1
$region0: #{tpu_custom_call.1}
  #allocation0 [shape = 'u32[]', space=smem, size = 0x4, offset = 0x4, fixed_abs, tag = 'smem constant byte address 0x4 - core index']
  #allocation1 [shape = 'u32[144,128]{1,0:T(1,128)}', space=vmem, size = 0x12000, scoped, tag = 'internal scratch']
  #allocation2 [shape = 'f32[8,64]{1,0:T(8,128)}', space=vmem, size = 0x1000, scoped, tag = 'scratch operand']
  %s0 = inlined_call_operand.vmem [shape: f32[8,32], index: 0, kind: input, shape index: {}]
  %s1 = inlined_call_operand.vmem [shape: bf16[32,64], index: 1, kind: input, shape index: {}]
  %s2 = inlined_call_operand.vmem [shape: f32[1,64], index: 2, kind: input, shape index: {}]
  %s3 = inlined_call_operand.vmem [shape: f32[64,16], index: 3, kind: input, shape index: {}]
  %s4 = inlined_call_operand.vmem [shape: f32[1,16], index: 4, kind: input, shape index: {}]
  %s5 = inlined_call_operand.hbm [shape: f32[8,16], index: 5, kind: output, shape index: {}]
  %s6 = sld [smem:[#allocation0]]
  $region34: #{tpu_custom_call.1} parent=0
    _
  %s8 = ssub.s32 1, %s6
  %s9 = scalar_select 0, %s8, %s6
  $region1: #{tpu_custom_call.1} parent=0
    #allocation3 [shape = 'u8[4096]{0}', space=vmem, size = 0x1000, scoped, tag = 'output window, operand 0, single buffered']
    #allocation4 [shape = 's32[1]{0}', space=sflag, size = 0x4, scoped, tag = 'scoped memory for tpu_custom_call.1']
    %10 = vsyncpa [#allocation4], 0
    // Predicated region
    $region2: #{tpu_custom_call.1} parent=1 // pred_check
      _
    $region3: #{tpu_custom_call.1} parent=1 // pred_check_branch
      %12 = sbr.rel (0) target = $region5
    $region4: #{tpu_custom_call.1} parent=1 // pred_region
      _
    $region5: #{tpu_custom_call.1} parent=1 // pred_fallthru
      _
    // Predicated region
    $region6: #{tpu_custom_call.1} parent=1 // pred_check
      _
    $region7: #{tpu_custom_call.1} parent=1 // pred_check_branch
      %14 = sbr.rel (0) target = $region9
    $region8: #{tpu_custom_call.1} parent=1 // pred_region
      _
    $region9: #{tpu_custom_call.1} parent=1 // pred_fallthru
      _
    // Predicated region
    $region10: #{tpu_custom_call.1} parent=1 // pred_check
      _
    $region11: #{tpu_custom_call.1} parent=1 // pred_check_branch
      %16 = sbr.rel (0) target = $region13
    $region12: #{tpu_custom_call.1} parent=1 // pred_region
      _
    $region13: #{tpu_custom_call.1} parent=1 // pred_fallthru
      _
    // Predicated region
    $region14: #{tpu_custom_call.1} parent=1 // pred_check
      _
    $region15: #{tpu_custom_call.1} parent=1 // pred_check_branch
      %18 = sbr.rel (0) target = $region17
    $region16: #{tpu_custom_call.1} parent=1 // pred_region
      _
    $region17: #{tpu_custom_call.1} parent=1 // pred_fallthru
      _
    // Predicated region
    $region18: #{tpu_custom_call.1} parent=1 // pred_check
      _
    $region19: #{tpu_custom_call.1} parent=1 // pred_check_branch
      %20 = sbr.rel (0) target = $region21
    $region20: #{tpu_custom_call.1} parent=1 // pred_region
      _
    $region21: #{tpu_custom_call.1} parent=1 // pred_fallthru
      _
    %p22 = scmp.eq.s32.totalorder 0, 0
    // Predicated region
    $region22: #{tpu_custom_call.1} parent=1 // pred_check
      %p23 = pneg %p22
    $region23: #{tpu_custom_call.1} parent=1 // pred_check_branch
      %25 = sbr.rel (%p23) target = $region25
    $region24: #{tpu_custom_call.1} parent=1 // pred_region
      %v26 = vld [vmem:[%s0] sm:$0xff]
      %v27 = vpack.c.bf16 %v26, %v26
      %v28 = vld [vmem:[%s1] sm:$0xf]
      %v29 = vld [vmem:[%s1 + $0x4] sm:$0xf]
      %v30 = vld [vmem:[%s1 + $0x8] sm:$0xf]
      %v31 = vld [vmem:[%s1 + $0xc] sm:$0xf]
      %v32 = vld [vmem:[%s2] sm:$0x1]
      %v34 = vlaneseq
      %v35 = vshrl.u32 %v34, 7
      %v36 = vsub.s32 0, %v35
      %v37 = vrot.slane %v32, %v36
      %v43 = vunpack.c.l.b16 %v28
      %v44 = vunpack.c.l.b16 %v29
      %v45 = vunpack.c.l.b16 %v30
      %v46 = vunpack.c.l.b16 %v31
      %v47 = vpack.c.b16 %v44, %v43
      %v48 = vpack.c.b16 %v46, %v45
      %vm51 = vcmask 261120
      %v53 = vsel %vm51, %v27, 0
      %55 = vmatprep.subr.bf16.mxu0 0
      %56 = vmatpush1.bf16.msra.mxu0 %v47
      %57 = vmatprep.subr.bf16.mxu0 0
      %58 = vmatpush1.bf16.msra.mxu0 %v48
      %59 = vmatprep.subr.bf16.mxu0 0
      %60 = vmatpush1.bf16.msra.mxu0 0
      %61 = vmatprep.subr.bf16.mxu0 0
      %62 = vmatpush1.bf16.msra.mxu0 0
      %63 = vmatprep.subr.bf16.mxu0 0
      %64 = vmatpush1.bf16.msra.mxu0 0
      %65 = vmatprep.subr.bf16.mxu0 0
      %66 = vmatpush1.bf16.msra.mxu0 0
      %67 = vmatprep.subr.bf16.mxu0 0
      %68 = vmatpush1.bf16.msra.mxu0 0
      %69 = vmatprep.subr.bf16.mxu0 0
      %70 = vmatpush1.bf16.msra.mxu0 0
      %71 = vmatprep.subr.bf16.mxu0 0
      %72 = vmatpush1.bf16.msra.mxu0 0
      %73 = vmatprep.subr.bf16.mxu0 0
      %74 = vmatpush1.bf16.msra.mxu0 0
      %75 = vmatprep.subr.bf16.mxu0 0
      %76 = vmatpush1.bf16.msra.mxu0 0
      %77 = vmatprep.subr.bf16.mxu0 0
      %78 = vmatpush1.bf16.msra.mxu0 0
      %79 = vmatprep.subr.bf16.mxu0 0
      %80 = vmatpush1.bf16.msra.mxu0 0
      %81 = vmatprep.subr.bf16.mxu0 0
      %82 = vmatpush1.bf16.msra.mxu0 0
      %83 = vmatprep.subr.bf16.mxu0 0
      %84 = vmatpush1.bf16.msra.mxu0 0
      %85 = vmatprep.subr.bf16.mxu0 0
      %86 = vmatpush1.bf16.msra.mxu0 0
      %87 = vmatprep.mubr.bf16.mxu0 0
      %88 = vmatmul.mubr.bf16.gmra.mrb[0].mxu0 %v53
      %v89 = vpop.f32.mrb[0].mxu0
      %v90 = vadd.f32 %v37, %v89
      %v91 = vpop.f32.mrb[0].mxu0
      %v92 = vpop.f32.mrb[0].mxu0
      %v93 = vpop.f32.mrb[0].mxu0
      %94 = vdwg.mxu0
      %v95 = vmax.f32 %v90, 0.0
      %vm96 = vcmask 523264
      %97 = vst.msk [vmem:[#allocation2] sm:$0xff] %vm96, %v95
    $region25: #{tpu_custom_call.1} parent=1 // pred_fallthru
      _
    %v98 = vld [vmem:[#allocation2] sm:$0xff]
    %v99 = vld [vmem:[%s3] sm:$0xff]
    %v100 = vld [vmem:[%s3 + $0x8] sm:$0xff]
    %v101 = vld [vmem:[%s3 + $0x10] sm:$0xff]
    %v102 = vld [vmem:[%s3 + $0x18] sm:$0xff]
    %v103 = vld [vmem:[%s3 + $0x20] sm:$0xff]
    %v104 = vld [vmem:[%s3 + $0x28] sm:$0xff]
    %v105 = vld [vmem:[%s3 + $0x30] sm:$0xff]
    %v106 = vld [vmem:[%s3 + $0x38] sm:$0xff]
    %v107 = vld [vmem:[%s4] sm:$0x1]
    %v109 = vlaneseq
    %v110 = vshrl.u32 %v109, 7
    %v111 = vsub.s32 0, %v110
    %v112 = vrot.slane %v107, %v111
    %vm114 = vcmask 523264
    %v116 = vsel %vm114, %v98, 0
    %118 = vmatprep.subr.mxu0 0.0
    %119 = vmatpush1.msra.mxu0 %v99
    %120 = vmatprep.subr.mxu0 0.0
    %121 = vmatpush1.msra.mxu0 %v100
    %122 = vmatprep.subr.mxu0 0.0
    %123 = vmatpush1.msra.mxu0 %v101
    %124 = vmatprep.subr.mxu0 0.0
    %125 = vmatpush1.msra.mxu0 %v102
    %126 = vmatprep.subr.mxu0 0.0
    %127 = vmatpush1.msra.mxu0 %v103
    %128 = vmatprep.subr.mxu0 0.0
    %129 = vmatpush1.msra.mxu0 %v104
    %130 = vmatprep.subr.mxu0 0.0
    %131 = vmatpush1.msra.mxu0 %v105
    %132 = vmatprep.subr.mxu0 0.0
    %133 = vmatpush1.msra.mxu0 %v106
    %134 = vmatprep.subr.mxu0 0.0
    %135 = vmatpush1.msra.mxu0 0.0
    %136 = vmatprep.subr.mxu0 0.0
    %137 = vmatpush1.msra.mxu0 0.0
    %138 = vmatprep.subr.mxu0 0.0
    %139 = vmatpush1.msra.mxu0 0.0
    %140 = vmatprep.subr.mxu0 0.0
    %141 = vmatpush1.msra.mxu0 0.0
    %142 = vmatprep.subr.mxu0 0.0
    %143 = vmatpush1.msra.mxu0 0.0
    %144 = vmatprep.subr.mxu0 0.0
    %145 = vmatpush1.msra.mxu0 0.0
    %146 = vmatprep.subr.mxu0 0.0
    %147 = vmatpush1.msra.mxu0 0.0
    %148 = vmatprep.subr.mxu0 0.0
    %149 = vmatpush1.msra.mxu0 0.0
    %150 = vmatprep.subr.mxu0 0.0
    %151 = vmatpush1.msra.mxu0 0.0
    %152 = vmatprep.subr.mxu0 0.0
    %153 = vmatpush1.msra.mxu0 0.0
    %154 = vmatprep.subr.mxu0 0.0
    %155 = vmatpush1.msra.mxu0 0.0
    %156 = vmatprep.subr.mxu0 0.0
    %157 = vmatpush1.msra.mxu0 0.0
    %158 = vmatprep.subr.mxu0 0.0
    %159 = vmatpush1.msra.mxu0 0.0
    %160 = vmatprep.subr.mxu0 0.0
    %161 = vmatpush1.msra.mxu0 0.0
    %162 = vmatprep.subr.mxu0 0.0
    %163 = vmatpush1.msra.mxu0 0.0
    %164 = vmatprep.subr.mxu0 0.0
    %165 = vmatpush1.msra.mxu0 0.0
    %166 = vmatprep.subr.mxu0 0.0
    %167 = vmatpush1.msra.mxu0 0.0
    %168 = vmatprep.subr.mxu0 0.0
    %169 = vmatpush1.msra.mxu0 0.0
    %170 = vmatprep.subr.mxu0 0.0
    %171 = vmatpush1.msra.mxu0 0.0
    %172 = vmatprep.subr.mxu0 0.0
    %173 = vmatpush1.msra.mxu0 0.0
    %174 = vmatprep.subr.mxu0 0.0
    %175 = vmatpush1.msra.mxu0 0.0
    %176 = vmatprep.subr.mxu0 0.0
    %177 = vmatpush1.msra.mxu0 0.0
    %178 = vmatprep.subr.mxu0 0.0
    %179 = vmatpush1.msra.mxu0 0.0
    %180 = vmatprep.subr.mxu0 0.0
    %181 = vmatpush1.msra.mxu0 0.0
    %182 = vmatprep.mubr.f32.mxu0 0.0
    %183 = vmatmul.mubr.f32.gmra.mrb[0].mxu0 %v116
    %v184 = vpop.f32.mrb[0].mxu0
    %v185 = vadd.f32 %v112, %v184
    %v186 = vpop.f32.mrb[0].mxu0
    %187 = vdwg.mxu0
    %vm188 = vcmask 130048
    %189 = vst.msk [vmem:[#allocation3] sm:$0xff] %vm188, %v185
    // Predicated region
    $region26: #{tpu_custom_call.1} parent=1 // pred_check
      _
    $region27: #{tpu_custom_call.1} parent=1 // pred_check_branch
      %191 = sbr.rel (0) target = $region29
    $region28: #{tpu_custom_call.1} parent=1 // pred_region
      %s193 = ssub.s32 128, 128
      %194 = vsyncadd [#allocation4], %s193
      %s196 = sshll.u32 [#allocation3], 4
      %s197 = int_to_ptr.vmem [resolvable:$true] %s196
      %199 = dma.vmem_to_hbm [thread:$0]  %s197, 128, %s5, [#allocation4]
    $region29: #{tpu_custom_call.1} parent=1 // pred_fallthru
      _
    // Predicated region
    $region30: #{tpu_custom_call.1} parent=1 // pred_check
      _
    $region31: #{tpu_custom_call.1} parent=1 // pred_check_branch
      %201 = sbr.rel (0) target = $region33
    $region32: #{tpu_custom_call.1} parent=1 // pred_region
      %202 = dma.done [#allocation4], 128
    $region33: #{tpu_custom_call.1} parent=1 // pred_fallthru
      _
    %203 = vsyncpa [#allocation4], 1

</llo_original>
